<compile_context>
chip_gen: v7x
topology: tpu7x:2x2x1
jax: 0.10.0
libtpu: 0.0.40
codegen_flags: <defaults>
</compile_context>

<pallas_src>
import functools

import numpy as np
import jax
import jax.numpy as jnp
from jax.experimental import pallas as pl
from jax.experimental.pallas import tpu as pltpu


# ----------------------------------------------------------------------------
# Helpers
# ----------------------------------------------------------------------------
def _round_up(n: int, m: int) -> int:
    return ((n + m - 1) // m) * m


def _make_act(act: str):
    if act == "relu":
        return lambda v: jnp.maximum(v, 0.0)
    elif act == "leaky":
        return lambda v: jnp.where(v >= 0.0, v, 0.01 * v)  # nn.LeakyReLU default
    elif act == "sigmoid":
        return jax.nn.sigmoid
    elif act == "tanh":
        return jnp.tanh
    else:
        raise ValueError(f"unknown act: {act}")


def _pick_tile_b(batch: int) -> int:
    """Batch tile. VMEM is not the binding constraint (footprint at 2048 rows is
    only a few MiB), so we go big to amortize per-grid-step overhead; for large
    batches we split into >=2 steps so v7x's two TensorCores both get work."""
    MAX_TILE = 2048
    if batch <= 512:
        return min(MAX_TILE, _round_up(batch, 8))
    return min(MAX_TILE, _round_up((batch + 1) // 2, 8))


# ----------------------------------------------------------------------------
# One-time parameter packing (host-side numpy; call once, reuse every forward).
# ----------------------------------------------------------------------------
def pack_params(params, features):
    """params: list of (W(in,out) f32, b(1,out) f32) for the 6 layers.
    Returns a dict with:
      w_pack : (rows, 256) bf16 — hidden-layer weights, rows concatenated, each
               layer's row block padded with zeros to the previous layer's
               carried width, columns zero-padded to a 128 multiple.
      b_pack : (8, 256) f32 — rows 0..4: hidden biases (zero-padded); row 5:
               final bias; row 6: final (16->1) weight laid out as a lane row.
    """
    dims = [features] + [int(w.shape[1]) for (w, _) in params]
    n_layers = len(params)          # 6
    n_hidden = n_layers - 1         # 5 MXU layers; the last layer runs on the VPU
    pack_cols = _round_up(max(dims[1:]), 128)                       # 256
    col_widths = [max(_round_up(dims[k + 1], 128), 128) for k in range(n_hidden)]
    row_sizes = [features] + col_widths[:-1]                        # carried widths
    row_offsets, off = [], 0
    for k in range(n_hidden):
        row_offsets.append(off)
        off += row_sizes[k]
    total_rows = _round_up(off, 8)

    w_np = np.zeros((total_rows, pack_cols), np.float32)
    for k in range(n_hidden):
        w, _ = params[k]
        w_np[row_offsets[k]:row_offsets[k] + dims[k], :dims[k + 1]] = np.asarray(
            w, np.float32)

    b_rows = _round_up(n_hidden + 2, 8)
    b_np = np.zeros((b_rows, pack_cols), np.float32)
    for k in range(n_hidden):
        _, b = params[k]
        b_np[k, :dims[k + 1]] = np.asarray(b, np.float32).reshape(-1)
    w_last, b_last = params[-1]
    b_np[n_hidden, 0] = float(np.asarray(b_last, np.float32).reshape(-1)[0])
    b_np[n_hidden + 1, :dims[-2]] = np.asarray(w_last, np.float32).reshape(-1)

    return dict(
        w_pack=jnp.asarray(w_np, dtype=jnp.bfloat16),
        b_pack=jnp.asarray(b_np, dtype=jnp.float32),
        row_offsets=tuple(row_offsets),
        row_sizes=tuple(row_sizes),
        col_widths=tuple(col_widths),
        n_hidden=n_hidden,
        dims=tuple(dims),
        features=features,
    )


# ----------------------------------------------------------------------------
# Kernel: full MLP on one batch tile; packed weights/biases stay VMEM-resident.
# ----------------------------------------------------------------------------
def _mlp_kernel(x_ref, w_ref, b_ref, o_ref, *, act_fn, row_offsets, row_sizes,
                col_widths, n_hidden, final_width):
    h = x_ref[...]  # (tile_b, features) f32
    for k in range(n_hidden):
        off, din, dout = row_offsets[k], row_sizes[k], col_widths[k]
        w = w_ref[off:off + din, 0:dout]        # bf16, lane-aligned slice (>=128)
        b = b_ref[k:k + 1, 0:dout]              # f32 (1, dout)
        # MXU matmul with bf16 inputs, f32 accumulation; bias + act stay f32.
        y = jnp.dot(h.astype(jnp.bfloat16), w,
                    preferred_element_type=jnp.float32) + b
        h = act_fn(y)
    # Final Linear(16, 1): VPU multiply + lane reduction instead of a near-empty
    # MXU pass. Weight row is zero beyond the true 16 lanes, so padded
    # activation columns (incl. sigmoid's act(0)=0.5) contribute nothing.
    w_last = b_ref[n_hidden + 1:n_hidden + 2, 0:final_width]   # (1, 128) f32
    b_last = b_ref[n_hidden:n_hidden + 1, 0:1]                 # (1, 1) f32
    o_ref[...] = jnp.sum(h * w_last, axis=-1, keepdims=True) + b_last


# ----------------------------------------------------------------------------
# Wrapper
# ----------------------------------------------------------------------------
def simple_disc_forward(x, packed, *, act="relu"):
    """x: (batch, features) f32. packed: output of pack_params()."""
    batch, features = x.shape
    assert features == packed["features"]
    dims = packed["dims"]
    n_layers = len(dims) - 1
    w_pack, b_pack = packed["w_pack"], packed["b_pack"]

    tile_b = _pick_tile_b(batch)
    grid = (pl.cdiv(batch, tile_b),)

    flops = 2 * batch * sum(dims[i] * dims[i + 1] for i in range(n_layers))
    transcendentals = batch * sum(dims[1:-1]) if act in ("sigmoid", "tanh") else 0
    bytes_accessed = (int(x.size) * 4 + int(w_pack.size) * 2
                      + int(b_pack.size) * 4 + batch * 4)

    kernel = functools.partial(
        _mlp_kernel,
        act_fn=_make_act(act),
        row_offsets=packed["row_offsets"],
        row_sizes=packed["row_sizes"],
        col_widths=packed["col_widths"],
        n_hidden=packed["n_hidden"],
        final_width=packed["col_widths"][-1],
    )

    out = pl.pallas_call(
        kernel,
        out_shape=jax.ShapeDtypeStruct((batch, 1), jnp.float32),
        grid_spec=pltpu.PrefetchScalarGridSpec(
            num_scalar_prefetch=0,
            grid=grid,
            in_specs=[
                # Batch-tiled activations: auto double-buffered across the grid.
                # Last partial block: OOB reads are garbage but row-local; OOB
                # output rows are clipped on writeback (no jnp.pad of x).
                pl.BlockSpec((tile_b, features), lambda i: (i, 0)),
                # Packed weights / biases: constant block index -> DMA'd once,
                # VMEM-resident across all grid steps.
                pl.BlockSpec(tuple(w_pack.shape), lambda i: (0, 0)),
                pl.BlockSpec(tuple(b_pack.shape), lambda i: (0, 0)),
            ],
            out_specs=pl.BlockSpec((tile_b, 1), lambda i: (i, 0)),
        ),
        compiler_params=pltpu.CompilerParams(
            dimension_semantics=("parallel",),
        ),
        cost_estimate=pl.CostEstimate(
            flops=flops,
            transcendentals=transcendentals,
            bytes_accessed=bytes_accessed,
        ),
    )(x, w_pack, b_pack)

    return out


# ----------------------------------------------------------------------------
# Params / references
# ----------------------------------------------------------------------------
def init_params(key, features):
    """Deterministic init; layer sizes from simple_disc.__init__."""
    dims = [features, 256, 128, 64, 32, 16, 1]
    params = []
    for i in range(6):
        key, kw, kb = jax.random.split(key, 3)
        fan_in, fan_out = dims[i], dims[i + 1]
        bound = 1.0 / jnp.sqrt(jnp.float32(fan_in))
        # Stored as (in, out): transpose of PyTorch's (out, in) convention.
        w = jax.random.uniform(kw, (fan_in, fan_out), jnp.float32, -bound, bound)
        b = jax.random.uniform(kb, (1, fan_out), jnp.float32, -bound, bound)
        params.append((w, b))
    return params


def reference_forward_kernel_math(x, params, *, act="relu"):
    """Mirrors kernel math: bf16 matmul inputs with f32 accumulation for the 5
    hidden layers; the final 16->1 layer stays pure f32 (VPU path)."""
    act_fn = _make_act(act)
    h = x.astype(jnp.float32)
    for (w, b) in params[:-1]:
        y = jnp.dot(h.astype(jnp.bfloat16), w.astype(jnp.bfloat16),
                    preferred_element_type=jnp.float32) + b.astype(jnp.float32)
        h = act_fn(y)
    w_last, b_last = params[-1]
    return h @ w_last + b_last


def reference_forward_f32(x, params, *, act="relu"):
    """Pure f32 reference (original PyTorch module semantics)."""
    act_fn = _make_act(act)
    h = x
    for i, (w, b) in enumerate(params):
        h = h @ w + b
        if i < len(params) - 1:
            h = act_fn(h)
    return h


# ----------------------------------------------------------------------------
if __name__ == "__main__":
    # Small shapes consistent with the module:
    #   features = vertexes * m_dim + vertexes * vertexes * b_dim
    vertexes, m_dim, b_dim = 8, 4, 2
    features = vertexes * m_dim + vertexes * vertexes * b_dim  # 32 + 128 = 160
    batch = 2
    act = "relu"

    key = jax.random.PRNGKey(0)
    key, kx = jax.random.split(key)
    x = jax.random.normal(kx, (batch, features), jnp.float32)
    params = init_params(key, features)
    packed = pack_params(params, features)   # packed ONCE, reused per forward

    out = simple_disc_forward(x, packed, act=act)
    out = jax.block_until_ready(out)
    assert out.shape == (batch, 1)

    # Tight check against a reference that mirrors the kernel's exact math.
    ref_k = reference_forward_kernel_math(x, params, act=act)
    assert jnp.allclose(out, ref_k, atol=2e-3, rtol=2e-3), "mismatch vs kernel-math ref"

    # Loose check against pure-f32 module semantics (bf16 weight quantization).
    ref_f32 = reference_forward_f32(x, params, act=act)
    assert jnp.allclose(out, ref_f32, atol=5e-2, rtol=5e-2), "mismatch vs f32 reference"

    print("KERNEL_OK")
</pallas_src>

<mosaic_0001>
module attributes {stable_mosaic.version = 11 : i64} {
  func.func @_mlp_kernel(%arg0: i32, %arg1: memref<8x160xf32, #tpu.memory_space<vmem>>, %arg2: memref<800x256xbf16, #tpu.memory_space<vmem>>, %arg3: memref<8x256xf32, #tpu.memory_space<vmem>>, %arg4: memref<8x1xf32, #tpu.memory_space<vmem>>) attributes {dimension_semantics = [#tpu.dimension_semantics<parallel>], iteration_bounds = array<i64: 1>, scalar_prefetch = 0 : i64, scratch_operands = 0 : i64, tpu.core_type = #tpu.core_type<tc>, window_params = [{transform_indices = @transform_0, window_bounds = array<i64: 8, 160>}, {pipeline_mode = #tpu.pipeline_mode<synchronous>, transform_indices = @transform_1, window_bounds = array<i64: 800, 256>}, {pipeline_mode = #tpu.pipeline_mode<synchronous>, transform_indices = @transform_2, window_bounds = array<i64: 8, 256>}, {transform_indices = @transform_3, window_bounds = array<i64: 8, 1>}]} {
    %c0 = arith.constant 0 : index
    %c0_0 = arith.constant 0 : index
    %0 = vector.load %arg1[%c0, %c0_0] : memref<8x160xf32, #tpu.memory_space<vmem>>, vector<8x160xf32>
    %c0_1 = arith.constant 0 : index
    %c0_2 = arith.constant 0 : index
    %1 = vector.load %arg2[%c0_1, %c0_2] : memref<800x256xbf16, #tpu.memory_space<vmem>>, vector<160x256xbf16>
    %c0_3 = arith.constant 0 : index
    %c0_4 = arith.constant 0 : index
    %2 = vector.load %arg3[%c0_3, %c0_4] : memref<8x256xf32, #tpu.memory_space<vmem>>, vector<1x256xf32>
    %3 = arith.truncf %0 : vector<8x160xf32> to vector<8x160xbf16>
    %cst = arith.constant dense<0.000000e+00> : vector<8x256xf32>
    %4 = tpu.matmul %3, %1, %cst {dimension_numbers = #tpu.dot_dimension_numbers<[1], [0], [0], [1], [0, 0, 1, 1], [], []>} : vector<8x160xbf16>, vector<160x256xbf16>, vector<8x256xf32> -> vector<8x256xf32>
    %5 = vector.broadcast %2 : vector<1x256xf32> to vector<8x256xf32>
    %6 = arith.addf %4, %5 : vector<8x256xf32>
    %cst_5 = arith.constant 0.000000e+00 : f32
    %7 = vector.broadcast %cst_5 : f32 to vector<8x256xf32>
    %8 = arith.maximumf %6, %7 : vector<8x256xf32>
    %c160 = arith.constant 160 : index
    %c0_6 = arith.constant 0 : index
    %9 = vector.load %arg2[%c160, %c0_6] : memref<800x256xbf16, #tpu.memory_space<vmem>>, vector<256x128xbf16>
    %c1 = arith.constant 1 : index
    %c0_7 = arith.constant 0 : index
    %10 = vector.load %arg3[%c1, %c0_7] : memref<8x256xf32, #tpu.memory_space<vmem>>, vector<1x128xf32>
    %11 = arith.truncf %8 : vector<8x256xf32> to vector<8x256xbf16>
    %cst_8 = arith.constant dense<0.000000e+00> : vector<8x128xf32>
    %12 = tpu.matmul %11, %9, %cst_8 {dimension_numbers = #tpu.dot_dimension_numbers<[1], [0], [0], [1], [0, 0, 1, 1], [], []>} : vector<8x256xbf16>, vector<256x128xbf16>, vector<8x128xf32> -> vector<8x128xf32>
    %13 = vector.broadcast %10 : vector<1x128xf32> to vector<8x128xf32>
    %14 = arith.addf %12, %13 : vector<8x128xf32>
    %cst_9 = arith.constant 0.000000e+00 : f32
    %15 = vector.broadcast %cst_9 : f32 to vector<8x128xf32>
    %16 = arith.maximumf %14, %15 : vector<8x128xf32>
    %c416 = arith.constant 416 : index
    %c0_10 = arith.constant 0 : index
    %17 = vector.load %arg2[%c416, %c0_10] : memref<800x256xbf16, #tpu.memory_space<vmem>>, vector<128x128xbf16>
    %c2 = arith.constant 2 : index
    %c0_11 = arith.constant 0 : index
    %18 = vector.load %arg3[%c2, %c0_11] : memref<8x256xf32, #tpu.memory_space<vmem>>, vector<1x128xf32>
    %19 = arith.truncf %16 : vector<8x128xf32> to vector<8x128xbf16>
    %cst_12 = arith.constant dense<0.000000e+00> : vector<8x128xf32>
    %20 = tpu.matmul %19, %17, %cst_12 {dimension_numbers = #tpu.dot_dimension_numbers<[1], [0], [0], [1], [0, 0, 1, 1], [], []>} : vector<8x128xbf16>, vector<128x128xbf16>, vector<8x128xf32> -> vector<8x128xf32>
    %21 = vector.broadcast %18 : vector<1x128xf32> to vector<8x128xf32>
    %22 = arith.addf %20, %21 : vector<8x128xf32>
    %cst_13 = arith.constant 0.000000e+00 : f32
    %23 = vector.broadcast %cst_13 : f32 to vector<8x128xf32>
    %24 = arith.maximumf %22, %23 : vector<8x128xf32>
    %c544 = arith.constant 544 : index
    %c0_14 = arith.constant 0 : index
    %25 = vector.load %arg2[%c544, %c0_14] : memref<800x256xbf16, #tpu.memory_space<vmem>>, vector<128x128xbf16>
    %c3 = arith.constant 3 : index
    %c0_15 = arith.constant 0 : index
    %26 = vector.load %arg3[%c3, %c0_15] : memref<8x256xf32, #tpu.memory_space<vmem>>, vector<1x128xf32>
    %27 = arith.truncf %24 : vector<8x128xf32> to vector<8x128xbf16>
    %cst_16 = arith.constant dense<0.000000e+00> : vector<8x128xf32>
    %28 = tpu.matmul %27, %25, %cst_16 {dimension_numbers = #tpu.dot_dimension_numbers<[1], [0], [0], [1], [0, 0, 1, 1], [], []>} : vector<8x128xbf16>, vector<128x128xbf16>, vector<8x128xf32> -> vector<8x128xf32>
    %29 = vector.broadcast %26 : vector<1x128xf32> to vector<8x128xf32>
    %30 = arith.addf %28, %29 : vector<8x128xf32>
    %cst_17 = arith.constant 0.000000e+00 : f32
    %31 = vector.broadcast %cst_17 : f32 to vector<8x128xf32>
    %32 = arith.maximumf %30, %31 : vector<8x128xf32>
    %c672 = arith.constant 672 : index
    %c0_18 = arith.constant 0 : index
    %33 = vector.load %arg2[%c672, %c0_18] : memref<800x256xbf16, #tpu.memory_space<vmem>>, vector<128x128xbf16>
    %c4 = arith.constant 4 : index
    %c0_19 = arith.constant 0 : index
    %34 = vector.load %arg3[%c4, %c0_19] : memref<8x256xf32, #tpu.memory_space<vmem>>, vector<1x128xf32>
    %35 = arith.truncf %32 : vector<8x128xf32> to vector<8x128xbf16>
    %cst_20 = arith.constant dense<0.000000e+00> : vector<8x128xf32>
    %36 = tpu.matmul %35, %33, %cst_20 {dimension_numbers = #tpu.dot_dimension_numbers<[1], [0], [0], [1], [0, 0, 1, 1], [], []>} : vector<8x128xbf16>, vector<128x128xbf16>, vector<8x128xf32> -> vector<8x128xf32>
    %37 = vector.broadcast %34 : vector<1x128xf32> to vector<8x128xf32>
    %38 = arith.addf %36, %37 : vector<8x128xf32>
    %cst_21 = arith.constant 0.000000e+00 : f32
    %39 = vector.broadcast %cst_21 : f32 to vector<8x128xf32>
    %40 = arith.maximumf %38, %39 : vector<8x128xf32>
    %c6 = arith.constant 6 : index
    %c0_22 = arith.constant 0 : index
    %41 = vector.load %arg3[%c6, %c0_22] : memref<8x256xf32, #tpu.memory_space<vmem>>, vector<1x128xf32>
    %c5 = arith.constant 5 : index
    %c0_23 = arith.constant 0 : index
    %42 = vector.load %arg3[%c5, %c0_23] : memref<8x256xf32, #tpu.memory_space<vmem>>, vector<1x1xf32>
    %43 = vector.broadcast %41 : vector<1x128xf32> to vector<8x128xf32>
    %44 = arith.mulf %40, %43 : vector<8x128xf32>
    %cst_24 = arith.constant dense<0.000000e+00> : vector<8xf32>
    %45 = vector.multi_reduction <add>, %44, %cst_24 [1] : vector<8x128xf32> to vector<8xf32>
    %46 = vector.shape_cast %45 : vector<8xf32> to vector<8x1xf32>
    %47 = vector.broadcast %42 : vector<1x1xf32> to vector<8x1xf32>
    %48 = arith.addf %46, %47 : vector<8x1xf32>
    %c0_25 = arith.constant 0 : index
    %c0_26 = arith.constant 0 : index
    %49 = vector.load %arg4[%c0_25, %c0_26] : memref<8x1xf32, #tpu.memory_space<vmem>>, vector<8x1xf32>
    tpu.vector_store %arg4[%c0_25, %c0_26], %48 {strides = array<i32>} : memref<8x1xf32, #tpu.memory_space<vmem>>, vector<8x1xf32>,
    return
  }
  func.func @transform_0(%arg0: i32) -> (i32, i32) {
    %c0_i32 = arith.constant 0 : i32
    %c0_i32_0 = arith.constant 0 : i32
    return %arg0, %c0_i32 : i32, i32
  }
  func.func @transform_1(%arg0: i32) -> (i32, i32) {
    %c0_i32 = arith.constant 0 : i32
    %c0_i32_0 = arith.constant 0 : i32
    %c0_i32_1 = arith.constant 0 : i32
    return %c0_i32, %c0_i32_0 : i32, i32
  }
  func.func @transform_2(%arg0: i32) -> (i32, i32) {
    %c0_i32 = arith.constant 0 : i32
    %c0_i32_0 = arith.constant 0 : i32
    %c0_i32_1 = arith.constant 0 : i32
    return %c0_i32, %c0_i32_0 : i32, i32
  }
  func.func @transform_3(%arg0: i32) -> (i32, i32) {
    %c0_i32 = arith.constant 0 : i32
    %c0_i32_0 = arith.constant 0 : i32
    return %arg0, %c0_i32 : i32, i32
  }
}

</mosaic_0001>

<llo_original>
// kernel: tpu_custom_call.1
$region0: #{tpu_custom_call.1}
  #allocation0 [shape = 'u32[]', space=smem, size = 0x4, offset = 0x4, fixed_abs, tag = 'smem constant byte address 0x4 - core index']
  #allocation1 [shape = 'u32[144,128]{1,0:T(1,128)}', space=vmem, size = 0x12000, scoped, tag = 'internal scratch']
  %s0 = inlined_call_operand.hbm [shape: f32[2,160], index: 0, kind: input, shape index: {}]
  %s1 = inlined_call_operand.hbm [shape: bf16[800,256], index: 1, kind: input, shape index: {}]
  %s2 = inlined_call_operand.hbm [shape: f32[8,256], index: 2, kind: input, shape index: {}]
  %s3 = inlined_call_operand.vmem [shape: f32[2,1], index: 3, kind: output, shape index: {}]
  %s4 = sld [smem:[#allocation0]]
  $region64: #{tpu_custom_call.1} parent=0
    _
  %s6 = ssub.s32 1, %s4
  %s7 = scalar_select 0, %s6, %s4
  $region1: #{tpu_custom_call.1} parent=0
    #allocation2 [shape = 'u8[8192]{0}', space=vmem, size = 0x2000, scoped, tag = 'input window, operand 0, single buffered']
    #allocation3 [shape = 's32[1]{0}', space=sflag, size = 0x4, scoped, tag = 'scoped memory for tpu_custom_call.1']
    #allocation4 [shape = 'u8[409600]{0}', space=vmem, size = 0x64000, scoped, tag = 'input window, operand 1, single buffered']
    #allocation5 [shape = 's32[1]{0}', space=sflag, size = 0x4, scoped, tag = 'scoped memory for tpu_custom_call.1']
    #allocation6 [shape = 'u8[8192]{0}', space=vmem, size = 0x2000, scoped, tag = 'input window, operand 2, single buffered']
    #allocation7 [shape = 'u8[4096]{0}', space=vmem, size = 0x1000, scoped, tag = 'output window, operand 0, single buffered']
    %8 = vsyncpa [#allocation3], 0
    %9 = vsyncpa [#allocation5], 0
    // Predicated region
    $region2: #{tpu_custom_call.1} parent=1 // pred_check
      _
    $region3: #{tpu_custom_call.1} parent=1 // pred_check_branch
      %11 = sbr.rel (0) target = $region5
    $region4: #{tpu_custom_call.1} parent=1 // pred_region
      %s13 = ssub.s32 256, 64
      %14 = vsyncadd [#allocation3], %s13
      %s15 = sshll.u32 [#allocation2], 4
      %s16 = int_to_ptr.vmem [resolvable:$true] %s15
      %21 = dma.hbm_to_vmem [thread:$0]  %s0, 64, %s16, [#allocation3], 64, 64, 4
    $region5: #{tpu_custom_call.1} parent=1 // pred_fallthru
      _
    // Predicated region
    $region6: #{tpu_custom_call.1} parent=1 // pred_check
      _
    $region7: #{tpu_custom_call.1} parent=1 // pred_check_branch
      %23 = sbr.rel (0) target = $region9
    $region8: #{tpu_custom_call.1} parent=1 // pred_region
      %s25 = ssub.s32 12800, 12800
      %26 = vsyncadd [#allocation5], %s25
      %s27 = sshll.u32 [#allocation4], 4
      %s28 = int_to_ptr.vmem [resolvable:$true] %s27
      %33 = dma.hbm_to_vmem [thread:$0]  %s1, 12800, %s28, [#allocation5], 128, 128, 8
    $region9: #{tpu_custom_call.1} parent=1 // pred_fallthru
      _
    // Predicated region
    $region10: #{tpu_custom_call.1} parent=1 // pred_check
      _
    $region11: #{tpu_custom_call.1} parent=1 // pred_check_branch
      %35 = sbr.rel (0) target = $region13
    $region12: #{tpu_custom_call.1} parent=1 // pred_region
      %s37 = ssub.s32 256, 256
      %38 = vsyncadd [#allocation5], %s37
      %s40 = sshll.u32 [#allocation6], 4
      %s41 = int_to_ptr.vmem [resolvable:$true] %s40
      %43 = dma.hbm_to_vmem [thread:$0]  %s2, 256, %s41, [#allocation5]
    $region13: #{tpu_custom_call.1} parent=1 // pred_fallthru
      _
    // Predicated region
    $region14: #{tpu_custom_call.1} parent=1 // pred_check
      _
    $region15: #{tpu_custom_call.1} parent=1 // pred_check_branch
      %45 = sbr.rel (0) target = $region17
    $region16: #{tpu_custom_call.1} parent=1 // pred_region
      %46 = dma.done [#allocation3], 256
    $region17: #{tpu_custom_call.1} parent=1 // pred_fallthru
      _
    // Predicated region
    $region18: #{tpu_custom_call.1} parent=1 // pred_check
      _
    $region19: #{tpu_custom_call.1} parent=1 // pred_check_branch
      %48 = sbr.rel (0) target = $region21
    $region20: #{tpu_custom_call.1} parent=1 // pred_region
      %49 = dma.done [#allocation5], 12800
    $region21: #{tpu_custom_call.1} parent=1 // pred_fallthru
      _
    // Predicated region
    $region22: #{tpu_custom_call.1} parent=1 // pred_check
      _
    $region23: #{tpu_custom_call.1} parent=1 // pred_check_branch
      %51 = sbr.rel (0) target = $region25
    $region24: #{tpu_custom_call.1} parent=1 // pred_region
      %52 = dma.done [#allocation5], 256
    $region25: #{tpu_custom_call.1} parent=1 // pred_fallthru
      _
    %v54 = vld [vmem:[#allocation2] sm:$0xf]
    %v55 = vld [vmem:[#allocation2 + $0x4] sm:$0xf]
    %v56 = vld [vmem:[#allocation2 + $0x8] sm:$0xf]
    %v57 = vld [vmem:[#allocation2 + $0xc] sm:$0xf]
    %v58 = vld [vmem:[#allocation4] sm:$0xff]
    %v59 = vld [vmem:[#allocation4 + $0x8] sm:$0xff]
    %v60 = vld [vmem:[#allocation4 + $0x10] sm:$0xff]
    %v61 = vld [vmem:[#allocation4 + $0x18] sm:$0xff]
    %v62 = vld [vmem:[#allocation4 + $0x20] sm:$0xff]
    %v63 = vld [vmem:[#allocation4 + $0x28] sm:$0xff]
    %v64 = vld [vmem:[#allocation4 + $0x30] sm:$0xff]
    %v65 = vld [vmem:[#allocation4 + $0x38] sm:$0xff]
    %v66 = vld [vmem:[#allocation4 + $0x40] sm:$0xff]
    %v67 = vld [vmem:[#allocation4 + $0x48] sm:$0xff]
    %v68 = vld [vmem:[#allocation4 + $0x50] sm:$0xff]
    %v69 = vld [vmem:[#allocation4 + $0x58] sm:$0xff]
    %v70 = vld [vmem:[#allocation4 + $0x60] sm:$0xff]
    %v71 = vld [vmem:[#allocation4 + $0x68] sm:$0xff]
    %v72 = vld [vmem:[#allocation4 + $0x70] sm:$0xff]
    %v73 = vld [vmem:[#allocation4 + $0x78] sm:$0xff]
    %v74 = vld [vmem:[#allocation4 + $0x80] sm:$0xff]
    %v75 = vld [vmem:[#allocation4 + $0x88] sm:$0xff]
    %v76 = vld [vmem:[#allocation4 + $0x90] sm:$0xff]
    %v77 = vld [vmem:[#allocation4 + $0x98] sm:$0xff]
    %v78 = vld [vmem:[#allocation6] ss:$8 sm:$0x3]
    %v83 = vcombine.low %v54, %v55
    %v84 = vcombine.low %v56, %v57
    %v86 = vunpack.c.l.s4 1983009808
    %v87 = vunpack.c.0.s8 %v86
    %v88 = vlaneseq
    %v89 = vshrl.u32 %v88, 7
    %v90 = vsub.s32 %v87, %v89
    %v91 = vrot.slane %v83, %v90
    %v93 = vunpack.c.l.s4 1983009808
    %v94 = vunpack.c.0.s8 %v93
    %v95 = vlaneseq
    %v96 = vshrl.u32 %v95, 7
    %v97 = vsub.s32 %v94, %v96
    %v98 = vrot.slane %v84, %v97
    %v99 = vcombine.low %v91, %v98
    %v100 = vcombine.high %v91, %v98
    %v103 = vpack.c.bf16 %v99, %v99
    %v104 = vpack.c.bf16 %v100, %v100
    %v106 = vlaneseq
    %v107 = vshrl.u32 %v106, 7
    %v108 = vsub.s32 0, %v107
    %v109 = vrot.slane %v78, %v108
    %v110 = vlaneseq
    %v111 = vshrl.u32 %v110, 7
    %v112 = vsub.s32 1, %v111
    %v113 = vrot.slane %v78, %v112
    %v136 = vunpack.c.l.b16 %v58
    %v137 = vunpack.c.h.b16 %v58
    %v138 = vunpack.c.l.b16 %v59
    %v139 = vunpack.c.h.b16 %v59
    %v140 = vunpack.c.l.b16 %v60
    %v141 = vunpack.c.h.b16 %v60
    %v142 = vunpack.c.l.b16 %v61
    %v143 = vunpack.c.h.b16 %v61
    %v144 = vunpack.c.l.b16 %v62
    %v145 = vunpack.c.h.b16 %v62
    %v146 = vunpack.c.l.b16 %v63
    %v147 = vunpack.c.h.b16 %v63
    %v148 = vunpack.c.l.b16 %v64
    %v149 = vunpack.c.h.b16 %v64
    %v150 = vunpack.c.l.b16 %v65
    %v151 = vunpack.c.h.b16 %v65
    %v152 = vunpack.c.l.b16 %v66
    %v153 = vunpack.c.h.b16 %v66
    %v154 = vunpack.c.l.b16 %v67
    %v155 = vunpack.c.h.b16 %v67
    %v156 = vunpack.c.l.b16 %v68
    %v157 = vunpack.c.h.b16 %v68
    %v158 = vunpack.c.l.b16 %v69
    %v159 = vunpack.c.h.b16 %v69
    %v160 = vunpack.c.l.b16 %v70
    %v161 = vunpack.c.h.b16 %v70
    %v162 = vunpack.c.l.b16 %v71
    %v163 = vunpack.c.h.b16 %v71
    %v164 = vunpack.c.l.b16 %v72
    %v165 = vunpack.c.h.b16 %v72
    %v166 = vunpack.c.l.b16 %v73
    %v167 = vunpack.c.h.b16 %v73
    %v168 = vunpack.c.l.b16 %v74
    %v169 = vunpack.c.h.b16 %v74
    %v170 = vunpack.c.l.b16 %v75
    %v171 = vunpack.c.h.b16 %v75
    %v172 = vunpack.c.l.b16 %v76
    %v173 = vunpack.c.h.b16 %v76
    %v174 = vunpack.c.l.b16 %v77
    %v175 = vunpack.c.h.b16 %v77
    %v176 = vpack.c.b16 %v138, %v136
    %v177 = vpack.c.b16 %v139, %v137
    %v178 = vpack.c.b16 %v142, %v140
    %v179 = vpack.c.b16 %v143, %v141
    %v180 = vpack.c.b16 %v146, %v144
    %v181 = vpack.c.b16 %v147, %v145
    %v182 = vpack.c.b16 %v150, %v148
    %v183 = vpack.c.b16 %v151, %v149
    %v184 = vpack.c.b16 %v154, %v152
    %v185 = vpack.c.b16 %v155, %v153
    %v186 = vpack.c.b16 %v158, %v156
    %v187 = vpack.c.b16 %v159, %v157
    %v188 = vpack.c.b16 %v162, %v160
    %v189 = vpack.c.b16 %v163, %v161
    %v190 = vpack.c.b16 %v166, %v164
    %v191 = vpack.c.b16 %v167, %v165
    %v192 = vpack.c.b16 %v170, %v168
    %v193 = vpack.c.b16 %v171, %v169
    %v194 = vpack.c.b16 %v174, %v172
    %v195 = vpack.c.b16 %v175, %v173
    %vm216 = vcmask 261120
    %v218 = vsel %vm216, %v104, 0
    %220 = vmatprep.subr.bf16.mxu0 %v177
    %221 = vmatpush1.bf16.msra.mxu0 %v176
    %222 = vmatprep.subr.bf16.mxu0 %v179
    %223 = vmatpush1.bf16.msra.mxu0 %v178
    %224 = vmatprep.subr.bf16.mxu0 %v181
    %225 = vmatpush1.bf16.msra.mxu0 %v180
    %226 = vmatprep.subr.bf16.mxu0 %v183
    %227 = vmatpush1.bf16.msra.mxu0 %v182
    %228 = vmatprep.subr.bf16.mxu0 %v185
    %229 = vmatpush1.bf16.msra.mxu0 %v184
    %230 = vmatprep.subr.bf16.mxu0 %v187
    %231 = vmatpush1.bf16.msra.mxu0 %v186
    %232 = vmatprep.subr.bf16.mxu0 %v189
    %233 = vmatpush1.bf16.msra.mxu0 %v188
    %234 = vmatprep.subr.bf16.mxu0 %v191
    %235 = vmatpush1.bf16.msra.mxu0 %v190
    %236 = vmatprep.subr.bf16.mxu0 %v193
    %237 = vmatpush1.bf16.msra.mxu0 %v192
    %238 = vmatprep.subr.bf16.mxu0 %v195
    %239 = vmatpush1.bf16.msra.mxu0 %v194
    %240 = vmatprep.subr.bf16.mxu0 0
    %241 = vmatpush1.bf16.msra.mxu0 0
    %242 = vmatprep.subr.bf16.mxu0 0
    %243 = vmatpush1.bf16.msra.mxu0 0
    %244 = vmatprep.subr.bf16.mxu0 0
    %245 = vmatpush1.bf16.msra.mxu0 0
    %246 = vmatprep.subr.bf16.mxu0 0
    %247 = vmatpush1.bf16.msra.mxu0 0
    %248 = vmatprep.subr.bf16.mxu0 0
    %249 = vmatpush1.bf16.msra.mxu0 0
    %250 = vmatprep.subr.bf16.mxu0 0
    %251 = vmatpush1.bf16.msra.mxu0 0
    %252 = vmatprep.mubr.bf16.mxu0 %v218
    %253 = vmatmul.mubr.bf16.gmra.mrb[0].mxu0 %v103
    %v254 = vpop.f32.mrb[0].mxu0
    %v255 = vadd.f32 %v109, %v254
    %v256 = vpop.f32.mrb[0].mxu0
    %v257 = vadd.f32 %v113, %v256
    %v258 = vpop.f32.mrb[0].mxu0
    %v259 = vpop.f32.mrb[0].mxu0
    %260 = vdwg.mxu0
    %v261 = vmax.f32 %v255, 0.0
    %v262 = vmax.f32 %v257, 0.0
    %v263 = vld [vmem:[#allocation4 + $0xa0] sm:$0xf]
    %v264 = vld [vmem:[#allocation4 + $0xa8] sm:$0xf]
    %v265 = vld [vmem:[#allocation4 + $0xb0] sm:$0xf]
    %v266 = vld [vmem:[#allocation4 + $0xb8] sm:$0xf]
    %v267 = vld [vmem:[#allocation4 + $0xc0] sm:$0xf]
    %v268 = vld [vmem:[#allocation4 + $0xc8] sm:$0xf]
    %v269 = vld [vmem:[#allocation4 + $0xd0] sm:$0xf]
    %v270 = vld [vmem:[#allocation4 + $0xd8] sm:$0xf]
    %v271 = vld [vmem:[#allocation4 + $0xe0] sm:$0xf]
    %v272 = vld [vmem:[#allocation4 + $0xe8] sm:$0xf]
    %v273 = vld [vmem:[#allocation4 + $0xf0] sm:$0xf]
    %v274 = vld [vmem:[#allocation4 + $0xf8] sm:$0xf]
    %v275 = vld [vmem:[#allocation4 + $0x100] sm:$0xf]
    %v276 = vld [vmem:[#allocation4 + $0x108] sm:$0xf]
    %v277 = vld [vmem:[#allocation4 + $0x110] sm:$0xf]
    %v278 = vld [vmem:[#allocation4 + $0x118] sm:$0xf]
    %v279 = vld [vmem:[#allocation4 + $0x120] sm:$0xf]
    %v280 = vld [vmem:[#allocation4 + $0x128] sm:$0xf]
    %v281 = vld [vmem:[#allocation4 + $0x130] sm:$0xf]
    %v282 = vld [vmem:[#allocation4 + $0x138] sm:$0xf]
    %v283 = vld [vmem:[#allocation4 + $0x140] sm:$0xf]
    %v284 = vld [vmem:[#allocation4 + $0x148] sm:$0xf]
    %v285 = vld [vmem:[#allocation4 + $0x150] sm:$0xf]
    %v286 = vld [vmem:[#allocation4 + $0x158] sm:$0xf]
    %v287 = vld [vmem:[#allocation4 + $0x160] sm:$0xf]
    %v288 = vld [vmem:[#allocation4 + $0x168] sm:$0xf]
    %v289 = vld [vmem:[#allocation4 + $0x170] sm:$0xf]
    %v290 = vld [vmem:[#allocation4 + $0x178] sm:$0xf]
    %v291 = vld [vmem:[#allocation4 + $0x180] sm:$0xf]
    %v292 = vld [vmem:[#allocation4 + $0x188] sm:$0xf]
    %v293 = vld [vmem:[#allocation4 + $0x190] sm:$0xf]
    %v294 = vld [vmem:[#allocation4 + $0x198] sm:$0xf]
    %v295 = vld [vmem:[#allocation6 + $0x1] ss:$0 sm:$0xff]
    %v296 = vpack.c.bf16 %v261, %v261
    %v297 = vpack.c.bf16 %v262, %v262
    %v330 = vunpack.c.l.b16 %v263
    %v331 = vunpack.c.l.b16 %v264
    %v332 = vunpack.c.l.b16 %v265
    %v333 = vunpack.c.l.b16 %v266
    %v334 = vunpack.c.l.b16 %v267
    %v335 = vunpack.c.l.b16 %v268
    %v336 = vunpack.c.l.b16 %v269
    %v337 = vunpack.c.l.b16 %v270
    %v338 = vunpack.c.l.b16 %v271
    %v339 = vunpack.c.l.b16 %v272
    %v340 = vunpack.c.l.b16 %v273
    %v341 = vunpack.c.l.b16 %v274
    %v342 = vunpack.c.l.b16 %v275
    %v343 = vunpack.c.l.b16 %v276
    %v344 = vunpack.c.l.b16 %v277
    %v345 = vunpack.c.l.b16 %v278
    %v346 = vunpack.c.l.b16 %v279
    %v347 = vunpack.c.l.b16 %v280
    %v348 = vunpack.c.l.b16 %v281
    %v349 = vunpack.c.l.b16 %v282
    %v350 = vunpack.c.l.b16 %v283
    %v351 = vunpack.c.l.b16 %v284
    %v352 = vunpack.c.l.b16 %v285
    %v353 = vunpack.c.l.b16 %v286
    %v354 = vunpack.c.l.b16 %v287
    %v355 = vunpack.c.l.b16 %v288
    %v356 = vunpack.c.l.b16 %v289
    %v357 = vunpack.c.l.b16 %v290
    %v358 = vunpack.c.l.b16 %v291
    %v359 = vunpack.c.l.b16 %v292
    %v360 = vunpack.c.l.b16 %v293
    %v361 = vunpack.c.l.b16 %v294
    %v362 = vpack.c.b16 %v331, %v330
    %v363 = vpack.c.b16 %v333, %v332
    %v364 = vpack.c.b16 %v335, %v334
    %v365 = vpack.c.b16 %v337, %v336
    %v366 = vpack.c.b16 %v339, %v338
    %v367 = vpack.c.b16 %v341, %v340
    %v368 = vpack.c.b16 %v343, %v342
    %v369 = vpack.c.b16 %v345, %v344
    %v370 = vpack.c.b16 %v347, %v346
    %v371 = vpack.c.b16 %v349, %v348
    %v372 = vpack.c.b16 %v351, %v350
    %v373 = vpack.c.b16 %v353, %v352
    %v374 = vpack.c.b16 %v355, %v354
    %v375 = vpack.c.b16 %v357, %v356
    %v376 = vpack.c.b16 %v359, %v358
    %v377 = vpack.c.b16 %v361, %v360
    %394 = vmatprep.subr.bf16.mxu0 0
    %395 = vmatpush1.bf16.msra.mxu0 %v362
    %396 = vmatprep.subr.bf16.mxu0 0
    %397 = vmatpush1.bf16.msra.mxu0 %v363
    %398 = vmatprep.subr.bf16.mxu0 0
    %399 = vmatpush1.bf16.msra.mxu0 %v364
    %400 = vmatprep.subr.bf16.mxu0 0
    %401 = vmatpush1.bf16.msra.mxu0 %v365
    %402 = vmatprep.subr.bf16.mxu0 0
    %403 = vmatpush1.bf16.msra.mxu0 %v366
    %404 = vmatprep.subr.bf16.mxu0 0
    %405 = vmatpush1.bf16.msra.mxu0 %v367
    %406 = vmatprep.subr.bf16.mxu0 0
    %407 = vmatpush1.bf16.msra.mxu0 %v368
    %408 = vmatprep.subr.bf16.mxu0 0
    %409 = vmatpush1.bf16.msra.mxu0 %v369
    %410 = vmatprep.subr.bf16.mxu0 0
    %411 = vmatpush1.bf16.msra.mxu0 %v370
    %412 = vmatprep.subr.bf16.mxu0 0
    %413 = vmatpush1.bf16.msra.mxu0 %v371
    %414 = vmatprep.subr.bf16.mxu0 0
    %415 = vmatpush1.bf16.msra.mxu0 %v372
    %416 = vmatprep.subr.bf16.mxu0 0
    %417 = vmatpush1.bf16.msra.mxu0 %v373
    %418 = vmatprep.subr.bf16.mxu0 0
    %419 = vmatpush1.bf16.msra.mxu0 %v374
    %420 = vmatprep.subr.bf16.mxu0 0
    %421 = vmatpush1.bf16.msra.mxu0 %v375
    %422 = vmatprep.subr.bf16.mxu0 0
    %423 = vmatpush1.bf16.msra.mxu0 %v376
    %424 = vmatprep.subr.bf16.mxu0 0
    %425 = vmatpush1.bf16.msra.mxu0 %v377
    %426 = vmatprep.mubr.bf16.mxu0 %v297
    %427 = vmatmul.mubr.bf16.gmra.mrb[0].mxu0 %v296
    %v428 = vpop.f32.mrb[0].mxu0
    %v429 = vadd.f32 %v295, %v428
    %v430 = vpop.f32.mrb[0].mxu0
    %v431 = vpop.f32.mrb[0].mxu0
    %v432 = vpop.f32.mrb[0].mxu0
    %433 = vdwg.mxu0
    %v434 = vmax.f32 %v429, 0.0
    %v435 = vld [vmem:[#allocation4 + $0x1a0] sm:$0xf]
    %v436 = vld [vmem:[#allocation4 + $0x1a8] sm:$0xf]
    %v437 = vld [vmem:[#allocation4 + $0x1b0] sm:$0xf]
    %v438 = vld [vmem:[#allocation4 + $0x1b8] sm:$0xf]
    %v439 = vld [vmem:[#allocation4 + $0x1c0] sm:$0xf]
    %v440 = vld [vmem:[#allocation4 + $0x1c8] sm:$0xf]
    %v441 = vld [vmem:[#allocation4 + $0x1d0] sm:$0xf]
    %v442 = vld [vmem:[#allocation4 + $0x1d8] sm:$0xf]
    %v443 = vld [vmem:[#allocation4 + $0x1e0] sm:$0xf]
    %v444 = vld [vmem:[#allocation4 + $0x1e8] sm:$0xf]
    %v445 = vld [vmem:[#allocation4 + $0x1f0] sm:$0xf]
    %v446 = vld [vmem:[#allocation4 + $0x1f8] sm:$0xf]
    %v447 = vld [vmem:[#allocation4 + $0x200] sm:$0xf]
    %v448 = vld [vmem:[#allocation4 + $0x208] sm:$0xf]
    %v449 = vld [vmem:[#allocation4 + $0x210] sm:$0xf]
    %v450 = vld [vmem:[#allocation4 + $0x218] sm:$0xf]
    %v451 = vld [vmem:[#allocation6 + $0x2] ss:$0 sm:$0xff]
    %v452 = vpack.c.bf16 %v434, %v434
    %v469 = vunpack.c.l.b16 %v435
    %v470 = vunpack.c.l.b16 %v436
    %v471 = vunpack.c.l.b16 %v437
    %v472 = vunpack.c.l.b16 %v438
    %v473 = vunpack.c.l.b16 %v439
    %v474 = vunpack.c.l.b16 %v440
    %v475 = vunpack.c.l.b16 %v441
    %v476 = vunpack.c.l.b16 %v442
    %v477 = vunpack.c.l.b16 %v443
    %v478 = vunpack.c.l.b16 %v444
    %v479 = vunpack.c.l.b16 %v445
    %v480 = vunpack.c.l.b16 %v446
    %v481 = vunpack.c.l.b16 %v447
    %v482 = vunpack.c.l.b16 %v448
    %v483 = vunpack.c.l.b16 %v449
    %v484 = vunpack.c.l.b16 %v450
    %v485 = vpack.c.b16 %v470, %v469
    %v486 = vpack.c.b16 %v472, %v471
    %v487 = vpack.c.b16 %v474, %v473
    %v488 = vpack.c.b16 %v476, %v475
    %v489 = vpack.c.b16 %v478, %v477
    %v490 = vpack.c.b16 %v480, %v479
    %v491 = vpack.c.b16 %v482, %v481
    %v492 = vpack.c.b16 %v484, %v483
    %501 = vmatprep.subr.bf16.mxu0 0
    %502 = vmatpush1.bf16.msra.mxu0 %v485
    %503 = vmatprep.subr.bf16.mxu0 0
    %504 = vmatpush1.bf16.msra.mxu0 %v486
    %505 = vmatprep.subr.bf16.mxu0 0
    %506 = vmatpush1.bf16.msra.mxu0 %v487
    %507 = vmatprep.subr.bf16.mxu0 0
    %508 = vmatpush1.bf16.msra.mxu0 %v488
    %509 = vmatprep.subr.bf16.mxu0 0
    %510 = vmatpush1.bf16.msra.mxu0 %v489
    %511 = vmatprep.subr.bf16.mxu0 0
    %512 = vmatpush1.bf16.msra.mxu0 %v490
    %513 = vmatprep.subr.bf16.mxu0 0
    %514 = vmatpush1.bf16.msra.mxu0 %v491
    %515 = vmatprep.subr.bf16.mxu0 0
    %516 = vmatpush1.bf16.msra.mxu0 %v492
    %517 = vmatprep.subr.bf16.mxu0 0
    %518 = vmatpush1.bf16.msra.mxu0 0
    %519 = vmatprep.subr.bf16.mxu0 0
    %520 = vmatpush1.bf16.msra.mxu0 0
    %521 = vmatprep.subr.bf16.mxu0 0
    %522 = vmatpush1.bf16.msra.mxu0 0
    %523 = vmatprep.subr.bf16.mxu0 0
    %524 = vmatpush1.bf16.msra.mxu0 0
    %525 = vmatprep.subr.bf16.mxu0 0
    %526 = vmatpush1.bf16.msra.mxu0 0
    %527 = vmatprep.subr.bf16.mxu0 0
    %528 = vmatpush1.bf16.msra.mxu0 0
    %529 = vmatprep.subr.bf16.mxu0 0
    %530 = vmatpush1.bf16.msra.mxu0 0
    %531 = vmatprep.subr.bf16.mxu0 0
    %532 = vmatpush1.bf16.msra.mxu0 0
    %533 = vmatprep.mubr.bf16.mxu0 0
    %534 = vmatmul.mubr.bf16.gmra.mrb[0].mxu0 %v452
    %v535 = vpop.f32.mrb[0].mxu0
    %v536 = vadd.f32 %v451, %v535
    %v537 = vpop.f32.mrb[0].mxu0
    %v538 = vpop.f32.mrb[0].mxu0
    %v539 = vpop.f32.mrb[0].mxu0
    %540 = vdwg.mxu0
    %v541 = vmax.f32 %v536, 0.0
    %v542 = vld [vmem:[#allocation4 + $0x220] sm:$0xf]
    %v543 = vld [vmem:[#allocation4 + $0x228] sm:$0xf]
    %v544 = vld [vmem:[#allocation4 + $0x230] sm:$0xf]
    %v545 = vld [vmem:[#allocation4 + $0x238] sm:$0xf]
    %v546 = vld [vmem:[#allocation4 + $0x240] sm:$0xf]
    %v547 = vld [vmem:[#allocation4 + $0x248] sm:$0xf]
    %v548 = vld [vmem:[#allocation4 + $0x250] sm:$0xf]
    %v549 = vld [vmem:[#allocation4 + $0x258] sm:$0xf]
    %v550 = vld [vmem:[#allocation4 + $0x260] sm:$0xf]
    %v551 = vld [vmem:[#allocation4 + $0x268] sm:$0xf]
    %v552 = vld [vmem:[#allocation4 + $0x270] sm:$0xf]
    %v553 = vld [vmem:[#allocation4 + $0x278] sm:$0xf]
    %v554 = vld [vmem:[#allocation4 + $0x280] sm:$0xf]
    %v555 = vld [vmem:[#allocation4 + $0x288] sm:$0xf]
    %v556 = vld [vmem:[#allocation4 + $0x290] sm:$0xf]
    %v557 = vld [vmem:[#allocation4 + $0x298] sm:$0xf]
    %v558 = vld [vmem:[#allocation6 + $0x3] ss:$0 sm:$0xff]
    %v559 = vpack.c.bf16 %v541, %v541
    %v576 = vunpack.c.l.b16 %v542
    %v577 = vunpack.c.l.b16 %v543
    %v578 = vunpack.c.l.b16 %v544
    %v579 = vunpack.c.l.b16 %v545
    %v580 = vunpack.c.l.b16 %v546
    %v581 = vunpack.c.l.b16 %v547
    %v582 = vunpack.c.l.b16 %v548
    %v583 = vunpack.c.l.b16 %v549
    %v584 = vunpack.c.l.b16 %v550
    %v585 = vunpack.c.l.b16 %v551
    %v586 = vunpack.c.l.b16 %v552
    %v587 = vunpack.c.l.b16 %v553
    %v588 = vunpack.c.l.b16 %v554
    %v589 = vunpack.c.l.b16 %v555
    %v590 = vunpack.c.l.b16 %v556
    %v591 = vunpack.c.l.b16 %v557
    %v592 = vpack.c.b16 %v577, %v576
    %v593 = vpack.c.b16 %v579, %v578
    %v594 = vpack.c.b16 %v581, %v580
    %v595 = vpack.c.b16 %v583, %v582
    %v596 = vpack.c.b16 %v585, %v584
    %v597 = vpack.c.b16 %v587, %v586
    %v598 = vpack.c.b16 %v589, %v588
    %v599 = vpack.c.b16 %v591, %v590
    %608 = vmatprep.subr.bf16.mxu0 0
    %609 = vmatpush1.bf16.msra.mxu0 %v592
    %610 = vmatprep.subr.bf16.mxu0 0
    %611 = vmatpush1.bf16.msra.mxu0 %v593
    %612 = vmatprep.subr.bf16.mxu0 0
    %613 = vmatpush1.bf16.msra.mxu0 %v594
    %614 = vmatprep.subr.bf16.mxu0 0
    %615 = vmatpush1.bf16.msra.mxu0 %v595
    %616 = vmatprep.subr.bf16.mxu0 0
    %617 = vmatpush1.bf16.msra.mxu0 %v596
    %618 = vmatprep.subr.bf16.mxu0 0
    %619 = vmatpush1.bf16.msra.mxu0 %v597
    %620 = vmatprep.subr.bf16.mxu0 0
    %621 = vmatpush1.bf16.msra.mxu0 %v598
    %622 = vmatprep.subr.bf16.mxu0 0
    %623 = vmatpush1.bf16.msra.mxu0 %v599
    %624 = vmatprep.subr.bf16.mxu0 0
    %625 = vmatpush1.bf16.msra.mxu0 0
    %626 = vmatprep.subr.bf16.mxu0 0
    %627 = vmatpush1.bf16.msra.mxu0 0
    %628 = vmatprep.subr.bf16.mxu0 0
    %629 = vmatpush1.bf16.msra.mxu0 0
    %630 = vmatprep.subr.bf16.mxu0 0
    %631 = vmatpush1.bf16.msra.mxu0 0
    %632 = vmatprep.subr.bf16.mxu0 0
    %633 = vmatpush1.bf16.msra.mxu0 0
    %634 = vmatprep.subr.bf16.mxu0 0
    %635 = vmatpush1.bf16.msra.mxu0 0
    %636 = vmatprep.subr.bf16.mxu0 0
    %637 = vmatpush1.bf16.msra.mxu0 0
    %638 = vmatprep.subr.bf16.mxu0 0
    %639 = vmatpush1.bf16.msra.mxu0 0
    %640 = vmatprep.mubr.bf16.mxu0 0
    %641 = vmatmul.mubr.bf16.gmra.mrb[0].mxu0 %v559
    %v642 = vpop.f32.mrb[0].mxu0
    %v643 = vadd.f32 %v558, %v642
    %v644 = vpop.f32.mrb[0].mxu0
    %v645 = vpop.f32.mrb[0].mxu0
    %v646 = vpop.f32.mrb[0].mxu0
    %647 = vdwg.mxu0
    %v648 = vmax.f32 %v643, 0.0
    %v649 = vld [vmem:[#allocation4 + $0x2a0] sm:$0xf]
    %v650 = vld [vmem:[#allocation4 + $0x2a8] sm:$0xf]
    %v651 = vld [vmem:[#allocation4 + $0x2b0] sm:$0xf]
    %v652 = vld [vmem:[#allocation4 + $0x2b8] sm:$0xf]
    %v653 = vld [vmem:[#allocation4 + $0x2c0] sm:$0xf]
    %v654 = vld [vmem:[#allocation4 + $0x2c8] sm:$0xf]
    %v655 = vld [vmem:[#allocation4 + $0x2d0] sm:$0xf]
    %v656 = vld [vmem:[#allocation4 + $0x2d8] sm:$0xf]
    %v657 = vld [vmem:[#allocation4 + $0x2e0] sm:$0xf]
    %v658 = vld [vmem:[#allocation4 + $0x2e8] sm:$0xf]
    %v659 = vld [vmem:[#allocation4 + $0x2f0] sm:$0xf]
    %v660 = vld [vmem:[#allocation4 + $0x2f8] sm:$0xf]
    %v661 = vld [vmem:[#allocation4 + $0x300] sm:$0xf]
    %v662 = vld [vmem:[#allocation4 + $0x308] sm:$0xf]
    %v663 = vld [vmem:[#allocation4 + $0x310] sm:$0xf]
    %v664 = vld [vmem:[#allocation4 + $0x318] sm:$0xf]
    %v665 = vld [vmem:[#allocation6 + $0x4] ss:$0 sm:$0xff]
    %v666 = vpack.c.bf16 %v648, %v648
    %v683 = vunpack.c.l.b16 %v649
    %v684 = vunpack.c.l.b16 %v650
    %v685 = vunpack.c.l.b16 %v651
    %v686 = vunpack.c.l.b16 %v652
    %v687 = vunpack.c.l.b16 %v653
    %v688 = vunpack.c.l.b16 %v654
    %v689 = vunpack.c.l.b16 %v655
    %v690 = vunpack.c.l.b16 %v656
    %v691 = vunpack.c.l.b16 %v657
    %v692 = vunpack.c.l.b16 %v658
    %v693 = vunpack.c.l.b16 %v659
    %v694 = vunpack.c.l.b16 %v660
    %v695 = vunpack.c.l.b16 %v661
    %v696 = vunpack.c.l.b16 %v662
    %v697 = vunpack.c.l.b16 %v663
    %v698 = vunpack.c.l.b16 %v664
    %v699 = vpack.c.b16 %v684, %v683
    %v700 = vpack.c.b16 %v686, %v685
    %v701 = vpack.c.b16 %v688, %v687
    %v702 = vpack.c.b16 %v690, %v689
    %v703 = vpack.c.b16 %v692, %v691
    %v704 = vpack.c.b16 %v694, %v693
    %v705 = vpack.c.b16 %v696, %v695
    %v706 = vpack.c.b16 %v698, %v697
    %715 = vmatprep.subr.bf16.mxu0 0
    %716 = vmatpush1.bf16.msra.mxu0 %v699
    %717 = vmatprep.subr.bf16.mxu0 0
    %718 = vmatpush1.bf16.msra.mxu0 %v700
    %719 = vmatprep.subr.bf16.mxu0 0
    %720 = vmatpush1.bf16.msra.mxu0 %v701
    %721 = vmatprep.subr.bf16.mxu0 0
    %722 = vmatpush1.bf16.msra.mxu0 %v702
    %723 = vmatprep.subr.bf16.mxu0 0
    %724 = vmatpush1.bf16.msra.mxu0 %v703
    %725 = vmatprep.subr.bf16.mxu0 0
    %726 = vmatpush1.bf16.msra.mxu0 %v704
    %727 = vmatprep.subr.bf16.mxu0 0
    %728 = vmatpush1.bf16.msra.mxu0 %v705
    %729 = vmatprep.subr.bf16.mxu0 0
    %730 = vmatpush1.bf16.msra.mxu0 %v706
    %731 = vmatprep.subr.bf16.mxu0 0
    %732 = vmatpush1.bf16.msra.mxu0 0
    %733 = vmatprep.subr.bf16.mxu0 0
    %734 = vmatpush1.bf16.msra.mxu0 0
    %735 = vmatprep.subr.bf16.mxu0 0
    %736 = vmatpush1.bf16.msra.mxu0 0
    %737 = vmatprep.subr.bf16.mxu0 0
    %738 = vmatpush1.bf16.msra.mxu0 0
    %739 = vmatprep.subr.bf16.mxu0 0
    %740 = vmatpush1.bf16.msra.mxu0 0
    %741 = vmatprep.subr.bf16.mxu0 0
    %742 = vmatpush1.bf16.msra.mxu0 0
    %743 = vmatprep.subr.bf16.mxu0 0
    %744 = vmatpush1.bf16.msra.mxu0 0
    %745 = vmatprep.subr.bf16.mxu0 0
    %746 = vmatpush1.bf16.msra.mxu0 0
    %747 = vmatprep.mubr.bf16.mxu0 0
    %748 = vmatmul.mubr.bf16.gmra.mrb[0].mxu0 %v666
    %v749 = vpop.f32.mrb[0].mxu0
    %v750 = vadd.f32 %v665, %v749
    %v751 = vpop.f32.mrb[0].mxu0
    %v752 = vpop.f32.mrb[0].mxu0
    %v753 = vpop.f32.mrb[0].mxu0
    %754 = vdwg.mxu0
    %v755 = vmax.f32 %v750, 0.0
    %v756 = vld [vmem:[#allocation6 + $0x6] ss:$0 sm:$0xff]
    %v757 = vld [vmem:[#allocation6 + $0x5] ss:$0 sm:$0xff]
    %v758 = vmul.f32 %v755, %v756
    %759 = vadd.xlane.f32.xlu0 %v758
    %v760 = vpop.xlane.xlu0 %759
    %v761 = vadd.f32 %v760, %v757
    %vm762 = vcmask 7168
    %763 = vst.msk [vmem:[#allocation7] sm:$0xff] %vm762, %v761
    // Predicated region
    $region26: #{tpu_custom_call.1} parent=1 // pred_check
      _
    $region27: #{tpu_custom_call.1} parent=1 // pred_check_branch
      %765 = sbr.rel (0) target = $region29
    $region28: #{tpu_custom_call.1} parent=1 // pred_region
      // Predicated region
      $region30: #{tpu_custom_call.1} parent=28 // pred_check
        _
      $region31: #{tpu_custom_call.1} parent=28 // pred_check_branch
        %767 = sbr.rel (0) target = $region33
      $region32: #{tpu_custom_call.1} parent=28 // pred_region
        // Predicated region
        $region34: #{tpu_custom_call.1} parent=32 // pred_check
          _
        $region35: #{tpu_custom_call.1} parent=32 // pred_check_branch
          %769 = sbr.rel target = $region37
        $region36: #{tpu_custom_call.1} parent=32 // pred_region
          // Predicated region
          $region49: #{tpu_custom_call.1} parent=36 // pred_check
            _
          $region50: #{tpu_custom_call.1} parent=36 // pred_check_branch
            %784 = sbr.rel (0) target = $region52
          $region51: #{tpu_custom_call.1} parent=36 // pred_region
            loop: start=0, step=1, limit=1
            $region53: #{tpu_custom_call.1} parent=51 // loop_pre_header
              _
            $region54: #{tpu_custom_call.1} parent=51 // loop_header
              %s787 = sphi 0, %s791
              %p788 = scmp.ge.s32.totalorder %s787, 1
              %s792 = sphi [#allocation7], [#allocation7]
              %s793 = sphi %s3, %s3
            $region55: #{tpu_custom_call.1} parent=51 // loop_header_branch
              %790 = sbr.rel (%p788) target = $region59
            $region56: #{tpu_custom_call.1} parent=51 // loop_body
              %v794 = vld [vmem:[%s792] sm:$0x3]
              %795 = vst [vmem:[%s793] sm:$0x3] %v794
            $region57: #{tpu_custom_call.1} parent=51 // loop_footer
              %s791 = sadd.s32 1, %s787
            $region58: #{tpu_custom_call.1} parent=51 // loop_footer_branch
              %786 = sbr.rel target = $region54
            $region59: #{tpu_custom_call.1} parent=51 // loop_exit
              _
          $region52: #{tpu_custom_call.1} parent=36 // pred_fallthru
            _
        $region37: #{tpu_custom_call.1} parent=32 // pred_fallthru
          _
        // Predicated region
        $region38: #{tpu_custom_call.1} parent=32 // pred_check
          _
        $region39: #{tpu_custom_call.1} parent=32 // pred_check_branch
          %771 = sbr.rel (0) target = $region41
        $region40: #{tpu_custom_call.1} parent=32 // pred_region
          loop: start=0, step=1, limit=1
          $region42: #{tpu_custom_call.1} parent=40 // loop_pre_header
            _
          $region43: #{tpu_custom_call.1} parent=40 // loop_header
            %s774 = sphi 0, %s778
            %p775 = scmp.ge.s32.totalorder %s774, 1
            %s779 = sphi [#allocation7], [#allocation7]
            %s780 = sphi %s3, %s3
          $region44: #{tpu_custom_call.1} parent=40 // loop_header_branch
            %777 = sbr.rel (%p775) target = $region48
          $region45: #{tpu_custom_call.1} parent=40 // loop_body
            %v781 = vld [vmem:[%s779] sm:$0x3]
            %782 = vst [vmem:[%s780] sm:$0x3] %v781
          $region46: #{tpu_custom_call.1} parent=40 // loop_footer
            %s778 = sadd.s32 1, %s774
          $region47: #{tpu_custom_call.1} parent=40 // loop_footer_branch
            %773 = sbr.rel target = $region43
          $region48: #{tpu_custom_call.1} parent=40 // loop_exit
            _
        $region41: #{tpu_custom_call.1} parent=32 // pred_fallthru
          _
      $region33: #{tpu_custom_call.1} parent=28 // pred_fallthru
        _
      %796 = vnop
    $region29: #{tpu_custom_call.1} parent=1 // pred_fallthru
      _
    // Predicated region
    $region60: #{tpu_custom_call.1} parent=1 // pred_check
      _
    $region61: #{tpu_custom_call.1} parent=1 // pred_check_branch
      %798 = sbr.rel (0) target = $region63
    $region62: #{tpu_custom_call.1} parent=1 // pred_region
      _
    $region63: #{tpu_custom_call.1} parent=1 // pred_fallthru
      _
    %799 = vsyncpa [#allocation3], 1
    %800 = vsyncpa [#allocation5], 1

</llo_original>
